<compile_context>
chip_gen: v7x
topology: tpu7x:2x2x1
jax: 0.10.0
libtpu: 0.0.40
codegen_flags: <defaults>
</compile_context>

<pallas_src>
import jax
import jax.numpy as jnp
from jax.experimental import pallas as pl
from jax.experimental.pallas import tpu as pltpu

N_BLOCKS = 3
HIDDEN = 32
BATCH = 2
SEQ = 8


def _fused_mlp_kernel(x_ref, w_ref, b_ref, o_ref):
    """Whole block chain fused: h = x; repeat h = relu(h @ W_i + b_i); store h.

    x_ref: (T, H) f32   w_ref: (N_BLOCKS, H, H) f32   b_ref: (N_BLOCKS, 1, H) f32
    Everything is fully resident in VMEM; the activation never leaves
    vregs/VMEM between blocks.
    """
    n_blocks = w_ref.shape[0]
    # Hoist bias reads out of the unrolled chain (keeps the per-stage body to
    # pure dot -> add -> max).
    biases = [b_ref[i] for i in range(n_blocks)]

    h = x_ref[...]
    # Static unroll is fine at N_BLOCKS=3.  If N_BLOCKS grows, switch to
    # lax.fori_loop(..., unroll=True) (or a grid axis over blocks) to bound
    # vreg live ranges.
    for i in range(n_blocks):
        h = jnp.dot(h, w_ref[i], preferred_element_type=jnp.float32)
        h = jnp.maximum(h + biases[i], 0.0)   # bias (1, H) broadcasts over rows
    o_ref[...] = h.astype(o_ref.dtype)


def _fused_forward_2d(x2d, w_stacked, b_stacked):
    """x2d: (T, H) f32, w_stacked: (N, H, H) f32, b_stacked: (N, 1, H) f32."""
    T, H = x2d.shape
    n_blocks = w_stacked.shape[0]
    vmem = pl.BlockSpec(memory_space=pltpu.MemorySpace.VMEM)

    # Advisory cost estimate so XLA schedules around the (overhead-dominated)
    # custom call sensibly.
    flops = n_blocks * (2 * T * H * H + 2 * T * H)        # matmul + bias + relu
    bytes_accessed = 4 * (x2d.size + w_stacked.size + b_stacked.size + T * H)
    cost = pl.CostEstimate(
        flops=flops, transcendentals=0, bytes_accessed=bytes_accessed)

    return pl.pallas_call(
        _fused_mlp_kernel,
        out_shape=jax.ShapeDtypeStruct((T, H), jnp.float32),
        in_specs=[vmem, vmem, vmem],
        out_specs=pl.BlockSpec(memory_space=pltpu.MemorySpace.VMEM),
        cost_estimate=cost,
        compiler_params=pltpu.CompilerParams(
            # Let XLA fuse the x reshape/producer into the call region; the
            # stacked weights/biases are plain parameters, no fusion needed.
            allow_input_fusion=[True, False, False],
        ),
    )(x2d, w_stacked, b_stacked)


def init_params(key, n_blocks=N_BLOCKS, hidden=HIDDEN):
    """Deterministic stacked Linear params: W (N,H,H), b (N,1,H).

    W is stored (H_in, H_out) so the kernel computes y = x @ W + b, matching
    PyTorch's x @ W_pt.T + b.  Mimics torch.nn.Linear default uniform init.
    """
    ws, bs = [], []
    bound = 1.0 / jnp.sqrt(hidden)
    for _ in range(n_blocks):
        kw, kb, key = jax.random.split(key, 3)
        ws.append(jax.random.uniform(kw, (hidden, hidden), jnp.float32, -bound, bound))
        bs.append(jax.random.uniform(kb, (1, hidden), jnp.float32, -bound, bound))
    return jnp.stack(ws, axis=0), jnp.stack(bs, axis=0)


@jax.jit
def model_forward(x, w_stacked, b_stacked):
    """Forward of `_Model`: sequential (checkpointed) blocks, fused into one kernel.

    Checkpointing / policy_fn only affect backward recomputation, so the whole
    chain is one fused Pallas call on the flattened (B*S, H) token slab.
    """
    B, S, H = x.shape
    out2d = _fused_forward_2d(x.reshape(B * S, H), w_stacked, b_stacked)
    return out2d.reshape(B, S, H)


if __name__ == "__main__":
    key = jax.random.PRNGKey(0)
    kx, kp = jax.random.split(key)
    x = jax.random.normal(kx, (BATCH, SEQ, HIDDEN), dtype=jnp.float32)
    w_stacked, b_stacked = init_params(kp)

    out = model_forward(x, w_stacked, b_stacked)
    jax.block_until_ready(out)

    # Pure-JAX reference of the same forward (same MXU precision path).
    ref = x.reshape(BATCH * SEQ, HIDDEN)
    for i in range(N_BLOCKS):
        ref = jnp.maximum(ref @ w_stacked[i] + b_stacked[i], 0.0)
    ref = ref.reshape(BATCH, SEQ, HIDDEN)
    assert jnp.allclose(out, ref, atol=1e-5, rtol=1e-5)

    # TODO(synk): checkpoint() / policy_fn have no forward-pass effect and are
    # intentionally not modeled (they only change backward recomputation).
    print("KERNEL_OK")
</pallas_src>

<mosaic_0001>
module attributes {stable_mosaic.version = 11 : i64} {
  func.func @_fused_mlp_kernel(%arg0: memref<16x32xf32, #tpu.memory_space<vmem>>, %arg1: memref<3x32x32xf32, #tpu.memory_space<vmem>>, %arg2: memref<3x1x32xf32, #tpu.memory_space<vmem>>, %arg3: memref<16x32xf32, #tpu.memory_space<vmem>>) attributes {dimension_semantics = [], scalar_prefetch = 0 : i64, scratch_operands = 0 : i64, tpu.core_type = #tpu.core_type<tc>} {
    %c0 = arith.constant 0 : index
    %c0_0 = arith.constant 0 : index
    %c0_1 = arith.constant 0 : index
    %0 = vector.load %arg2[%c0, %c0_0, %c0_1] : memref<3x1x32xf32, #tpu.memory_space<vmem>>, vector<1x1x32xf32>
    %1 = vector.shape_cast %0 : vector<1x1x32xf32> to vector<1x32xf32>
    %c1 = arith.constant 1 : index
    %c0_2 = arith.constant 0 : index
    %c0_3 = arith.constant 0 : index
    %2 = vector.load %arg2[%c1, %c0_2, %c0_3] : memref<3x1x32xf32, #tpu.memory_space<vmem>>, vector<1x1x32xf32>
    %3 = vector.shape_cast %2 : vector<1x1x32xf32> to vector<1x32xf32>
    %c2 = arith.constant 2 : index
    %c0_4 = arith.constant 0 : index
    %c0_5 = arith.constant 0 : index
    %4 = vector.load %arg2[%c2, %c0_4, %c0_5] : memref<3x1x32xf32, #tpu.memory_space<vmem>>, vector<1x1x32xf32>
    %5 = vector.shape_cast %4 : vector<1x1x32xf32> to vector<1x32xf32>
    %c0_6 = arith.constant 0 : index
    %c0_7 = arith.constant 0 : index
    %6 = vector.load %arg0[%c0_6, %c0_7] : memref<16x32xf32, #tpu.memory_space<vmem>>, vector<16x32xf32>
    %c0_8 = arith.constant 0 : index
    %c0_9 = arith.constant 0 : index
    %c0_10 = arith.constant 0 : index
    %7 = vector.load %arg1[%c0_8, %c0_9, %c0_10] : memref<3x32x32xf32, #tpu.memory_space<vmem>>, vector<1x32x32xf32>
    %8 = vector.shape_cast %7 : vector<1x32x32xf32> to vector<32x32xf32>
    %cst = arith.constant dense<0.000000e+00> : vector<16x32xf32>
    %9 = tpu.matmul %6, %8, %cst {dimension_numbers = #tpu.dot_dimension_numbers<[1], [0], [0], [1], [0, 0, 1, 1], [], []>} : vector<16x32xf32>, vector<32x32xf32>, vector<16x32xf32> -> vector<16x32xf32>
    %10 = vector.broadcast %1 : vector<1x32xf32> to vector<16x32xf32>
    %11 = arith.addf %9, %10 : vector<16x32xf32>
    %cst_11 = arith.constant 0.000000e+00 : f32
    %12 = vector.broadcast %cst_11 : f32 to vector<16x32xf32>
    %13 = arith.maximumf %11, %12 : vector<16x32xf32>
    %c1_12 = arith.constant 1 : index
    %c0_13 = arith.constant 0 : index
    %c0_14 = arith.constant 0 : index
    %14 = vector.load %arg1[%c1_12, %c0_13, %c0_14] : memref<3x32x32xf32, #tpu.memory_space<vmem>>, vector<1x32x32xf32>
    %15 = vector.shape_cast %14 : vector<1x32x32xf32> to vector<32x32xf32>
    %cst_15 = arith.constant dense<0.000000e+00> : vector<16x32xf32>
    %16 = tpu.matmul %13, %15, %cst_15 {dimension_numbers = #tpu.dot_dimension_numbers<[1], [0], [0], [1], [0, 0, 1, 1], [], []>} : vector<16x32xf32>, vector<32x32xf32>, vector<16x32xf32> -> vector<16x32xf32>
    %17 = vector.broadcast %3 : vector<1x32xf32> to vector<16x32xf32>
    %18 = arith.addf %16, %17 : vector<16x32xf32>
    %cst_16 = arith.constant 0.000000e+00 : f32
    %19 = vector.broadcast %cst_16 : f32 to vector<16x32xf32>
    %20 = arith.maximumf %18, %19 : vector<16x32xf32>
    %c2_17 = arith.constant 2 : index
    %c0_18 = arith.constant 0 : index
    %c0_19 = arith.constant 0 : index
    %21 = vector.load %arg1[%c2_17, %c0_18, %c0_19] : memref<3x32x32xf32, #tpu.memory_space<vmem>>, vector<1x32x32xf32>
    %22 = vector.shape_cast %21 : vector<1x32x32xf32> to vector<32x32xf32>
    %cst_20 = arith.constant dense<0.000000e+00> : vector<16x32xf32>
    %23 = tpu.matmul %20, %22, %cst_20 {dimension_numbers = #tpu.dot_dimension_numbers<[1], [0], [0], [1], [0, 0, 1, 1], [], []>} : vector<16x32xf32>, vector<32x32xf32>, vector<16x32xf32> -> vector<16x32xf32>
    %24 = vector.broadcast %5 : vector<1x32xf32> to vector<16x32xf32>
    %25 = arith.addf %23, %24 : vector<16x32xf32>
    %cst_21 = arith.constant 0.000000e+00 : f32
    %26 = vector.broadcast %cst_21 : f32 to vector<16x32xf32>
    %27 = arith.maximumf %25, %26 : vector<16x32xf32>
    %c0_22 = arith.constant 0 : index
    %c0_23 = arith.constant 0 : index
    %28 = vector.load %arg3[%c0_22, %c0_23] : memref<16x32xf32, #tpu.memory_space<vmem>>, vector<16x32xf32>
    tpu.vector_store %arg3[%c0_22, %c0_23], %27 {strides = array<i32>} : memref<16x32xf32, #tpu.memory_space<vmem>>, vector<16x32xf32>,
    return
  }
}

</mosaic_0001>

<llo_original>
// kernel: model_forward.2
$region0: #{model_forward.2}
  #allocation0 [shape = 'u32[]', space=smem, size = 0x4, offset = 0x4, fixed_abs, tag = 'smem constant byte address 0x4 - core index']
  #allocation1 [shape = 'u32[144,128]{1,0:T(1,128)}', space=vmem, size = 0x12000, scoped, tag = 'internal scratch']
  %s0 = inlined_call_operand.hbm [shape: f32[3,32,32], index: 0, kind: input, shape index: {}]
  %s1 = inlined_call_operand.vmem [shape: f32[3,1,32], index: 1, kind: input, shape index: {}]
  %s2 = inlined_call_operand.vmem [shape: f32[2,8,32], index: 2, kind: input, shape index: {}]
  %s3 = inlined_call_operand.hbm [shape: f32[16,32], index: 3, kind: output, shape index: {}]
  %s4 = sld [smem:[#allocation0]]
  $region26: #{model_forward.2} parent=0
    _
  %s6 = ssub.s32 1, %s4
  %s7 = scalar_select 0, %s6, %s4
  $region1: #{model_forward.2} parent=0
    #allocation2 [shape = 'u8[49152]{0}', space=vmem, size = 0xc000, scoped, tag = 'input window, operand 1, single buffered']
    #allocation3 [shape = 's32[1]{0}', space=sflag, size = 0x4, scoped, tag = 'scoped memory for model_forward.2']
    #allocation4 [shape = 's32[1]{0}', space=sflag, size = 0x4, scoped, tag = 'scoped memory for model_forward.2']
    #allocation5 [shape = 'u8[8192]{0}', space=vmem, size = 0x2000, scoped, tag = 'output window, operand 0, single buffered']
    #allocation6 [shape = 'u8[8192]{0}', space=vmem, size = 0x2000, dematerialized = true, scoped, tag = 'FusionAdapter Buffer %fusion.1 = f32[16,32]{1,0:T(8,128)} fusion(%param_2.1), kind=kLoop, calls=%fused_computation.1.clone, metadata={op_name="jit(model_forward)/reshape" stack_frame_id=7}']
    %8 = vsyncpa [#allocation3], 0
    %9 = vsyncpa [#allocation4], 0
    // Predicated region
    $region2: #{model_forward.2} parent=1 // pred_check
      _
    $region3: #{model_forward.2} parent=1 // pred_check_branch
      %11 = sbr.rel (0) target = $region5
    $region4: #{model_forward.2} parent=1 // pred_region
      _
    $region5: #{model_forward.2} parent=1 // pred_fallthru
      _
    // Predicated region
    $region6: #{model_forward.2} parent=1 // pred_check
      _
    $region7: #{model_forward.2} parent=1 // pred_check_branch
      %13 = sbr.rel (0) target = $region9
    $region8: #{model_forward.2} parent=1 // pred_region
      %s15 = ssub.s32 1536, 1536
      %16 = vsyncadd [#allocation3], %s15
      %s17 = sshll.u32 [#allocation2], 4
      %s18 = int_to_ptr.vmem [resolvable:$true] %s17
      %23 = dma.hbm_to_vmem [thread:$0]  %s0, 1536, %s18, [#allocation3], 128, 128, 8
    $region9: #{model_forward.2} parent=1 // pred_fallthru
      _
    // Predicated region
    $region10: #{model_forward.2} parent=1 // pred_check
      _
    $region11: #{model_forward.2} parent=1 // pred_check_branch
      %25 = sbr.rel (0) target = $region13
    $region12: #{model_forward.2} parent=1 // pred_region
      _
    $region13: #{model_forward.2} parent=1 // pred_fallthru
      _
    // Predicated region
    $region14: #{model_forward.2} parent=1 // pred_check
      _
    $region15: #{model_forward.2} parent=1 // pred_check_branch
      %27 = sbr.rel (0) target = $region17
    $region16: #{model_forward.2} parent=1 // pred_region
      %28 = dma.done [#allocation3], 1536
    $region17: #{model_forward.2} parent=1 // pred_fallthru
      _
    %v29 = vld [vmem:[%s2] sm:$0xff]
    %31 = vst [vmem:[#allocation6] sm:$0xff] %v29
    %s32 = scalar_lea.vmem %s2, 8
    %v33 = vld [vmem:[%s32] sm:$0xff]
    %s34 = scalar_lea.vmem [#allocation6], 8
    %36 = vst [vmem:[%s34] sm:$0xff] %v33
    %v37 = vld [vmem:[%s1] sm:$0x1]
    %s38 = scalar_lea.vmem %s1, 1
    %v39 = vld [vmem:[%s38] sm:$0x1]
    %s40 = scalar_lea.vmem %s1, 2
    %v41 = vld [vmem:[%s40] sm:$0x1]
    %v42 = vld [vmem:[#allocation6] sm:$0xff]
    %v43 = vld [vmem:[#allocation6 + $0x8] sm:$0xff]
    %v44 = vld [vmem:[#allocation2] sm:$0xff]
    %v45 = vld [vmem:[#allocation2 + $0x8] sm:$0xff]
    %v46 = vld [vmem:[#allocation2 + $0x10] sm:$0xff]
    %v47 = vld [vmem:[#allocation2 + $0x18] sm:$0xff]
    %v49 = vlaneseq
    %v50 = vshrl.u32 %v49, 7
    %v51 = vsub.s32 0, %v50
    %v52 = vrot.slane %v37, %v51
    %vm54 = vcmask 261120
    %v56 = vsel %vm54, %v42, 0
    %v59 = vsel %vm54, %v43, 0
    %61 = vmatprep.subr.mxu0 0.0
    %62 = vmatpush1.msra.mxu0 %v44
    %63 = vmatprep.subr.mxu0 0.0
    %64 = vmatpush1.msra.mxu0 %v45
    %65 = vmatprep.subr.mxu0 0.0
    %66 = vmatpush1.msra.mxu0 %v46
    %67 = vmatprep.subr.mxu0 0.0
    %68 = vmatpush1.msra.mxu0 %v47
    %69 = vmatprep.subr.mxu0 0.0
    %70 = vmatpush1.msra.mxu0 0.0
    %71 = vmatprep.subr.mxu0 0.0
    %72 = vmatpush1.msra.mxu0 0.0
    %73 = vmatprep.subr.mxu0 0.0
    %74 = vmatpush1.msra.mxu0 0.0
    %75 = vmatprep.subr.mxu0 0.0
    %76 = vmatpush1.msra.mxu0 0.0
    %77 = vmatprep.subr.mxu0 0.0
    %78 = vmatpush1.msra.mxu0 0.0
    %79 = vmatprep.subr.mxu0 0.0
    %80 = vmatpush1.msra.mxu0 0.0
    %81 = vmatprep.subr.mxu0 0.0
    %82 = vmatpush1.msra.mxu0 0.0
    %83 = vmatprep.subr.mxu0 0.0
    %84 = vmatpush1.msra.mxu0 0.0
    %85 = vmatprep.subr.mxu0 0.0
    %86 = vmatpush1.msra.mxu0 0.0
    %87 = vmatprep.subr.mxu0 0.0
    %88 = vmatpush1.msra.mxu0 0.0
    %89 = vmatprep.subr.mxu0 0.0
    %90 = vmatpush1.msra.mxu0 0.0
    %91 = vmatprep.subr.mxu0 0.0
    %92 = vmatpush1.msra.mxu0 0.0
    %93 = vmatprep.subr.mxu0 0.0
    %94 = vmatpush1.msra.mxu0 0.0
    %95 = vmatprep.subr.mxu0 0.0
    %96 = vmatpush1.msra.mxu0 0.0
    %97 = vmatprep.subr.mxu0 0.0
    %98 = vmatpush1.msra.mxu0 0.0
    %99 = vmatprep.subr.mxu0 0.0
    %100 = vmatpush1.msra.mxu0 0.0
    %101 = vmatprep.subr.mxu0 0.0
    %102 = vmatpush1.msra.mxu0 0.0
    %103 = vmatprep.subr.mxu0 0.0
    %104 = vmatpush1.msra.mxu0 0.0
    %105 = vmatprep.subr.mxu0 0.0
    %106 = vmatpush1.msra.mxu0 0.0
    %107 = vmatprep.subr.mxu0 0.0
    %108 = vmatpush1.msra.mxu0 0.0
    %109 = vmatprep.subr.mxu0 0.0
    %110 = vmatpush1.msra.mxu0 0.0
    %111 = vmatprep.subr.mxu0 0.0
    %112 = vmatpush1.msra.mxu0 0.0
    %113 = vmatprep.subr.mxu0 0.0
    %114 = vmatpush1.msra.mxu0 0.0
    %115 = vmatprep.subr.mxu0 0.0
    %116 = vmatpush1.msra.mxu0 0.0
    %117 = vmatprep.subr.mxu0 0.0
    %118 = vmatpush1.msra.mxu0 0.0
    %119 = vmatprep.subr.mxu0 0.0
    %120 = vmatpush1.msra.mxu0 0.0
    %121 = vmatprep.subr.mxu0 0.0
    %122 = vmatpush1.msra.mxu0 0.0
    %123 = vmatprep.subr.mxu0 0.0
    %124 = vmatpush1.msra.mxu0 0.0
    %125 = vmatprep.mubr.f32.mxu0 0.0
    %126 = vmatmul.mubr.f32.gmra.mrb[0].mxu0 %v56
    %v127 = vpop.f32.mrb[0].mxu0
    %v128 = vadd.f32 %v52, %v127
    %v129 = vpop.f32.mrb[0].mxu0
    %130 = vmatprep.mubr.f32.mxu0 0.0
    %131 = vmatmul.mubr.f32.gmra.mrb[0].mxu0 %v59
    %v132 = vpop.f32.mrb[0].mxu0
    %v133 = vadd.f32 %v52, %v132
    %v134 = vpop.f32.mrb[0].mxu0
    %135 = vdwg.mxu0
    %v136 = vmax.f32 %v128, 0.0
    %v137 = vmax.f32 %v133, 0.0
    %s138 = scalar_lea.vmem [#allocation2], 32
    %v139 = vld [vmem:[%s138] sm:$0xff]
    %v140 = vld [vmem:[%s138 + $0x8] sm:$0xff]
    %v141 = vld [vmem:[%s138 + $0x10] sm:$0xff]
    %v142 = vld [vmem:[%s138 + $0x18] sm:$0xff]
    %v144 = vlaneseq
    %v145 = vshrl.u32 %v144, 7
    %v146 = vsub.s32 0, %v145
    %v147 = vrot.slane %v39, %v146
    %v150 = vsel %vm54, %v136, 0
    %v153 = vsel %vm54, %v137, 0
    %155 = vmatprep.subr.mxu0 0.0
    %156 = vmatpush1.msra.mxu0 %v139
    %157 = vmatprep.subr.mxu0 0.0
    %158 = vmatpush1.msra.mxu0 %v140
    %159 = vmatprep.subr.mxu0 0.0
    %160 = vmatpush1.msra.mxu0 %v141
    %161 = vmatprep.subr.mxu0 0.0
    %162 = vmatpush1.msra.mxu0 %v142
    %163 = vmatprep.subr.mxu0 0.0
    %164 = vmatpush1.msra.mxu0 0.0
    %165 = vmatprep.subr.mxu0 0.0
    %166 = vmatpush1.msra.mxu0 0.0
    %167 = vmatprep.subr.mxu0 0.0
    %168 = vmatpush1.msra.mxu0 0.0
    %169 = vmatprep.subr.mxu0 0.0
    %170 = vmatpush1.msra.mxu0 0.0
    %171 = vmatprep.subr.mxu0 0.0
    %172 = vmatpush1.msra.mxu0 0.0
    %173 = vmatprep.subr.mxu0 0.0
    %174 = vmatpush1.msra.mxu0 0.0
    %175 = vmatprep.subr.mxu0 0.0
    %176 = vmatpush1.msra.mxu0 0.0
    %177 = vmatprep.subr.mxu0 0.0
    %178 = vmatpush1.msra.mxu0 0.0
    %179 = vmatprep.subr.mxu0 0.0
    %180 = vmatpush1.msra.mxu0 0.0
    %181 = vmatprep.subr.mxu0 0.0
    %182 = vmatpush1.msra.mxu0 0.0
    %183 = vmatprep.subr.mxu0 0.0
    %184 = vmatpush1.msra.mxu0 0.0
    %185 = vmatprep.subr.mxu0 0.0
    %186 = vmatpush1.msra.mxu0 0.0
    %187 = vmatprep.subr.mxu0 0.0
    %188 = vmatpush1.msra.mxu0 0.0
    %189 = vmatprep.subr.mxu0 0.0
    %190 = vmatpush1.msra.mxu0 0.0
    %191 = vmatprep.subr.mxu0 0.0
    %192 = vmatpush1.msra.mxu0 0.0
    %193 = vmatprep.subr.mxu0 0.0
    %194 = vmatpush1.msra.mxu0 0.0
    %195 = vmatprep.subr.mxu0 0.0
    %196 = vmatpush1.msra.mxu0 0.0
    %197 = vmatprep.subr.mxu0 0.0
    %198 = vmatpush1.msra.mxu0 0.0
    %199 = vmatprep.subr.mxu0 0.0
    %200 = vmatpush1.msra.mxu0 0.0
    %201 = vmatprep.subr.mxu0 0.0
    %202 = vmatpush1.msra.mxu0 0.0
    %203 = vmatprep.subr.mxu0 0.0
    %204 = vmatpush1.msra.mxu0 0.0
    %205 = vmatprep.subr.mxu0 0.0
    %206 = vmatpush1.msra.mxu0 0.0
    %207 = vmatprep.subr.mxu0 0.0
    %208 = vmatpush1.msra.mxu0 0.0
    %209 = vmatprep.subr.mxu0 0.0
    %210 = vmatpush1.msra.mxu0 0.0
    %211 = vmatprep.subr.mxu0 0.0
    %212 = vmatpush1.msra.mxu0 0.0
    %213 = vmatprep.subr.mxu0 0.0
    %214 = vmatpush1.msra.mxu0 0.0
    %215 = vmatprep.subr.mxu0 0.0
    %216 = vmatpush1.msra.mxu0 0.0
    %217 = vmatprep.subr.mxu0 0.0
    %218 = vmatpush1.msra.mxu0 0.0
    %219 = vmatprep.mubr.f32.mxu0 0.0
    %220 = vmatmul.mubr.f32.gmra.mrb[0].mxu0 %v150
    %v221 = vpop.f32.mrb[0].mxu0
    %v222 = vadd.f32 %v147, %v221
    %v223 = vpop.f32.mrb[0].mxu0
    %224 = vmatprep.mubr.f32.mxu0 0.0
    %225 = vmatmul.mubr.f32.gmra.mrb[0].mxu0 %v153
    %v226 = vpop.f32.mrb[0].mxu0
    %v227 = vadd.f32 %v147, %v226
    %v228 = vpop.f32.mrb[0].mxu0
    %229 = vdwg.mxu0
    %v230 = vmax.f32 %v222, 0.0
    %v231 = vmax.f32 %v227, 0.0
    %s232 = scalar_lea.vmem [#allocation2], 64
    %v233 = vld [vmem:[%s232] sm:$0xff]
    %v234 = vld [vmem:[%s232 + $0x8] sm:$0xff]
    %v235 = vld [vmem:[%s232 + $0x10] sm:$0xff]
    %v236 = vld [vmem:[%s232 + $0x18] sm:$0xff]
    %v238 = vlaneseq
    %v239 = vshrl.u32 %v238, 7
    %v240 = vsub.s32 0, %v239
    %v241 = vrot.slane %v41, %v240
    %v244 = vsel %vm54, %v230, 0
    %v247 = vsel %vm54, %v231, 0
    %249 = vmatprep.subr.mxu0 0.0
    %250 = vmatpush1.msra.mxu0 %v233
    %251 = vmatprep.subr.mxu0 0.0
    %252 = vmatpush1.msra.mxu0 %v234
    %253 = vmatprep.subr.mxu0 0.0
    %254 = vmatpush1.msra.mxu0 %v235
    %255 = vmatprep.subr.mxu0 0.0
    %256 = vmatpush1.msra.mxu0 %v236
    %257 = vmatprep.subr.mxu0 0.0
    %258 = vmatpush1.msra.mxu0 0.0
    %259 = vmatprep.subr.mxu0 0.0
    %260 = vmatpush1.msra.mxu0 0.0
    %261 = vmatprep.subr.mxu0 0.0
    %262 = vmatpush1.msra.mxu0 0.0
    %263 = vmatprep.subr.mxu0 0.0
    %264 = vmatpush1.msra.mxu0 0.0
    %265 = vmatprep.subr.mxu0 0.0
    %266 = vmatpush1.msra.mxu0 0.0
    %267 = vmatprep.subr.mxu0 0.0
    %268 = vmatpush1.msra.mxu0 0.0
    %269 = vmatprep.subr.mxu0 0.0
    %270 = vmatpush1.msra.mxu0 0.0
    %271 = vmatprep.subr.mxu0 0.0
    %272 = vmatpush1.msra.mxu0 0.0
    %273 = vmatprep.subr.mxu0 0.0
    %274 = vmatpush1.msra.mxu0 0.0
    %275 = vmatprep.subr.mxu0 0.0
    %276 = vmatpush1.msra.mxu0 0.0
    %277 = vmatprep.subr.mxu0 0.0
    %278 = vmatpush1.msra.mxu0 0.0
    %279 = vmatprep.subr.mxu0 0.0
    %280 = vmatpush1.msra.mxu0 0.0
    %281 = vmatprep.subr.mxu0 0.0
    %282 = vmatpush1.msra.mxu0 0.0
    %283 = vmatprep.subr.mxu0 0.0
    %284 = vmatpush1.msra.mxu0 0.0
    %285 = vmatprep.subr.mxu0 0.0
    %286 = vmatpush1.msra.mxu0 0.0
    %287 = vmatprep.subr.mxu0 0.0
    %288 = vmatpush1.msra.mxu0 0.0
    %289 = vmatprep.subr.mxu0 0.0
    %290 = vmatpush1.msra.mxu0 0.0
    %291 = vmatprep.subr.mxu0 0.0
    %292 = vmatpush1.msra.mxu0 0.0
    %293 = vmatprep.subr.mxu0 0.0
    %294 = vmatpush1.msra.mxu0 0.0
    %295 = vmatprep.subr.mxu0 0.0
    %296 = vmatpush1.msra.mxu0 0.0
    %297 = vmatprep.subr.mxu0 0.0
    %298 = vmatpush1.msra.mxu0 0.0
    %299 = vmatprep.subr.mxu0 0.0
    %300 = vmatpush1.msra.mxu0 0.0
    %301 = vmatprep.subr.mxu0 0.0
    %302 = vmatpush1.msra.mxu0 0.0
    %303 = vmatprep.subr.mxu0 0.0
    %304 = vmatpush1.msra.mxu0 0.0
    %305 = vmatprep.subr.mxu0 0.0
    %306 = vmatpush1.msra.mxu0 0.0
    %307 = vmatprep.subr.mxu0 0.0
    %308 = vmatpush1.msra.mxu0 0.0
    %309 = vmatprep.subr.mxu0 0.0
    %310 = vmatpush1.msra.mxu0 0.0
    %311 = vmatprep.subr.mxu0 0.0
    %312 = vmatpush1.msra.mxu0 0.0
    %313 = vmatprep.mubr.f32.mxu0 0.0
    %314 = vmatmul.mubr.f32.gmra.mrb[0].mxu0 %v244
    %v315 = vpop.f32.mrb[0].mxu0
    %v316 = vadd.f32 %v241, %v315
    %v317 = vpop.f32.mrb[0].mxu0
    %318 = vmatprep.mubr.f32.mxu0 0.0
    %319 = vmatmul.mubr.f32.gmra.mrb[0].mxu0 %v247
    %v320 = vpop.f32.mrb[0].mxu0
    %v321 = vadd.f32 %v241, %v320
    %v322 = vpop.f32.mrb[0].mxu0
    %323 = vdwg.mxu0
    %v324 = vmax.f32 %v316, 0.0
    %v325 = vmax.f32 %v321, 0.0
    %326 = vst.msk [vmem:[#allocation5] sm:$0xff] %vm54, %v324
    %327 = vst.msk [vmem:[#allocation5 + $0x8] sm:$0xff] %vm54, %v325
    // Predicated region
    $region18: #{model_forward.2} parent=1 // pred_check
      _
    $region19: #{model_forward.2} parent=1 // pred_check_branch
      %329 = sbr.rel (0) target = $region21
    $region20: #{model_forward.2} parent=1 // pred_region
      %s331 = ssub.s32 256, 256
      %332 = vsyncadd [#allocation4], %s331
      %s333 = sshll.u32 [#allocation5], 4
      %s334 = int_to_ptr.vmem [resolvable:$true] %s333
      %339 = dma.vmem_to_hbm [thread:$0]  %s334, 256, %s3, [#allocation4], 128, 128, 8
    $region21: #{model_forward.2} parent=1 // pred_fallthru
      _
    // Predicated region
    $region22: #{model_forward.2} parent=1 // pred_check
      _
    $region23: #{model_forward.2} parent=1 // pred_check_branch
      %341 = sbr.rel (0) target = $region25
    $region24: #{model_forward.2} parent=1 // pred_region
      %342 = dma.done [#allocation4], 256
    $region25: #{model_forward.2} parent=1 // pred_fallthru
      _
    %343 = vsyncpa [#allocation3], 1
    %344 = vsyncpa [#allocation4], 1

</llo_original>
